<compile_context>
chip_gen: v6e
topology: v6e:2x2x1
jax: 0.10.0
libtpu: 0.0.40
codegen_flags: <defaults>
</compile_context>

<pallas_src>
import jax
import jax.numpy as jnp
from jax.experimental import pallas as pl
from jax.experimental.pallas import tpu as pltpu

_LANE = 128


def _round_up(x: int, m: int) -> int:
    return ((x + m - 1) // m) * m


def _scaled_l1_kernel(pred_ref, tgt_ref, part_ref, acc_ref):
    step = pl.program_id(1)

    @pl.when(step == 0)
    def _():
        acc_ref[...] = jnp.zeros_like(acc_ref)

    # Hot path: pure VPU — upcast, abs-diff, vector add.  Weights and 1/N are
    # applied per-lane on the tiny partials in the wrapper (exact, since each
    # lane always holds a single fixed channel).
    p = pred_ref[...].astype(jnp.float32)
    t = tgt_ref[...].astype(jnp.float32)
    acc_ref[...] += jnp.abs(p - t)

    @pl.when(step == pl.num_programs(1) - 1)
    def _():
        tb, lane = acc_ref.shape
        # Fold the (tb,128) accumulator down to one (8,128) vreg-block with
        # plain VPU adds (no cross-lane reduce inside the kernel).
        part_ref[...] = jnp.sum(acc_ref[...].reshape(tb // 8, 8, lane), axis=0)


def scaled_l1_loss(output, target, weights, *, row_tile=512, n_cores=2):
    """Weighted L1 loss with global mean, computed in a Pallas TPU kernel."""
    assert output.shape == target.shape
    B, C = output.shape
    assert weights.shape == (C,)
    # TODO(synk): channel counts that do not divide 128 would need a per-row
    # weight layout; the module's default (C == 4) always satisfies this.
    assert _LANE % C == 0

    total = B * C                                  # true element count (mean)
    rows = -(-total // _LANE)                      # ceil(total / 128)
    tb = min(_round_up(max(row_tile, 1), 8),
             _round_up(-(-rows // n_cores), 8))
    padded_rows = _round_up(rows, n_cores * tb)
    steps = padded_rows // (n_cores * tb)
    padded_elems = padded_rows * _LANE

    def _flat_pad(x):
        # Zero padding is exact: padded |diff| == 0 contributes nothing.
        x = x.reshape(-1)
        if padded_elems != total:
            x = jnp.pad(x, (0, padded_elems - total))
        return x.reshape(padded_rows, _LANE)

    pred_p = _flat_pad(output)     # native dtype; upcast happens in-kernel
    tgt_p = _flat_pad(target)

    partials = pl.pallas_call(
        _scaled_l1_kernel,
        out_shape=jax.ShapeDtypeStruct((n_cores * 8, _LANE), jnp.float32),
        grid_spec=pltpu.PrefetchScalarGridSpec(
            num_scalar_prefetch=0,
            grid=(n_cores, steps),
            in_specs=[
                pl.BlockSpec((tb, _LANE), lambda c, i: (c * steps + i, 0)),  # output
                pl.BlockSpec((tb, _LANE), lambda c, i: (c * steps + i, 0)),  # target
            ],
            out_specs=pl.BlockSpec((8, _LANE), lambda c, i: (c, 0)),  # per-core partial
            scratch_shapes=[pltpu.VMEM((tb, _LANE), jnp.float32)],
        ),
        compiler_params=pltpu.CompilerParams(
            # Outer axis shards across TensorCores on v7x; inner axis is the
            # sequential reduction over row tiles.
            dimension_semantics=("parallel", "arbitrary"),
        ),
    )(pred_p, tgt_p)

    # Lane-dense weight row: lane l holds channel l % C; fold in the mean's 1/N.
    w_row = (jnp.tile(weights.astype(jnp.float32), _LANE // C)
             / float(total)).reshape(1, _LANE)

    # Tiny final reduction over the (n_cores*8, 128) partials (fused XLA reduce).
    return jnp.sum(partials * w_row)


if __name__ == "__main__":
    key = jax.random.PRNGKey(0)
    k1, k2, k3, k4 = jax.random.split(key, 4)

    # --- primary small-shape test: B=16, C=4 (matches ScaledL1Loss default) ---
    B, C = 16, 4
    output = jax.random.normal(k1, (B, C), dtype=jnp.float32)
    target = jax.random.normal(k2, (B, C), dtype=jnp.float32)
    weights = jnp.array([1.0, 1.0, 1.0, 1.0], dtype=jnp.float32)

    loss = scaled_l1_loss(output, target, weights)
    jax.block_until_ready(loss)
    ref = jnp.mean(jnp.abs(output - target) * weights)
    assert jnp.allclose(loss, ref, rtol=1e-5, atol=1e-6), (loss, ref)

    # --- multi-step grid path (forces steps > 1 with a small row_tile) ---
    B2 = 1024
    out2 = jax.random.normal(k3, (B2, C), dtype=jnp.float32)
    tgt2 = jax.random.normal(k4, (B2, C), dtype=jnp.float32)
    w2 = jnp.array([0.5, 1.0, 2.0, 4.0], dtype=jnp.float32)
    loss2 = scaled_l1_loss(out2, tgt2, w2, row_tile=8)
    jax.block_until_ready(loss2)
    ref2 = jnp.mean(jnp.abs(out2 - tgt2) * w2)
    assert jnp.allclose(loss2, ref2, rtol=1e-5, atol=1e-6), (loss2, ref2)

    # --- native bf16 inputs (no wrapper upcast; kernel upcasts on the VPU) ---
    loss3 = scaled_l1_loss(out2.astype(jnp.bfloat16), tgt2.astype(jnp.bfloat16), w2)
    jax.block_until_ready(loss3)
    ref3 = jnp.mean(jnp.abs(out2.astype(jnp.bfloat16).astype(jnp.float32)
                            - tgt2.astype(jnp.bfloat16).astype(jnp.float32)) * w2)
    assert jnp.allclose(loss3, ref3, rtol=1e-2, atol=1e-3), (loss3, ref3)

    print("KERNEL_OK")
</pallas_src>

<mosaic_0001>
module attributes {stable_mosaic.version = 11 : i64} {
  func.func @_scaled_l1_kernel(%arg0: i32, %arg1: i32, %arg2: memref<8x128xf32, #tpu.memory_space<vmem>>, %arg3: memref<8x128xf32, #tpu.memory_space<vmem>>, %arg4: memref<8x128xf32, #tpu.memory_space<vmem>>, %arg5: memref<8x128xf32, #tpu.memory_space<vmem>>) attributes {dimension_semantics = [#tpu.dimension_semantics<parallel>, #tpu.dimension_semantics<arbitrary>], iteration_bounds = array<i64: 2, 1>, scalar_prefetch = 0 : i64, scratch_operands = 1 : i64, tpu.core_type = #tpu.core_type<tc>, window_params = [{transform_indices = @transform_0, window_bounds = array<i64: 8, 128>}, {transform_indices = @transform_1, window_bounds = array<i64: 8, 128>}, {transform_indices = @transform_2, window_bounds = array<i64: 8, 128>}]} {
    %c0_i32 = arith.constant 0 : i32
    %0 = arith.cmpi eq, %arg1, %c0_i32 : i32
    %1 = arith.extui %0 : i1 to i32
    %c0_i32_0 = arith.constant 0 : i32
    %2 = arith.cmpi ne, %1, %c0_i32_0 : i32
    scf.if %2 {
      %cst = arith.constant 0.000000e+00 : f32
      %13 = vector.broadcast %cst : f32 to vector<8x128xf32>
      %c0_10 = arith.constant 0 : index
      %c0_11 = arith.constant 0 : index
      %14 = vector.load %arg5[%c0_10, %c0_11] : memref<8x128xf32, #tpu.memory_space<vmem>>, vector<8x128xf32>
      tpu.vector_store %arg5[%c0_10, %c0_11], %13 {strides = array<i32>} : memref<8x128xf32, #tpu.memory_space<vmem>>, vector<8x128xf32>,
    } else {
    }
    %c0 = arith.constant 0 : index
    %c0_1 = arith.constant 0 : index
    %3 = vector.load %arg2[%c0, %c0_1] : memref<8x128xf32, #tpu.memory_space<vmem>>, vector<8x128xf32>
    %c0_2 = arith.constant 0 : index
    %c0_3 = arith.constant 0 : index
    %4 = vector.load %arg3[%c0_2, %c0_3] : memref<8x128xf32, #tpu.memory_space<vmem>>, vector<8x128xf32>
    %c0_4 = arith.constant 0 : index
    %c0_5 = arith.constant 0 : index
    %5 = vector.load %arg5[%c0_4, %c0_5] : memref<8x128xf32, #tpu.memory_space<vmem>>, vector<8x128xf32>
    %6 = arith.subf %3, %4 : vector<8x128xf32>
    %7 = math.absf %6 : vector<8x128xf32>
    %8 = arith.addf %5, %7 : vector<8x128xf32>
    %c0_6 = arith.constant 0 : index
    %c0_7 = arith.constant 0 : index
    %9 = vector.load %arg5[%c0_6, %c0_7] : memref<8x128xf32, #tpu.memory_space<vmem>>, vector<8x128xf32>
    tpu.vector_store %arg5[%c0_6, %c0_7], %8 {strides = array<i32>} : memref<8x128xf32, #tpu.memory_space<vmem>>, vector<8x128xf32>,
    %c0_i32_8 = arith.constant 0 : i32
    %10 = arith.cmpi eq, %arg1, %c0_i32_8 : i32
    %11 = arith.extui %10 : i1 to i32
    %c0_i32_9 = arith.constant 0 : i32
    %12 = arith.cmpi ne, %11, %c0_i32_9 : i32
    scf.if %12 {
      %c0_10 = arith.constant 0 : index
      %c0_11 = arith.constant 0 : index
      %13 = vector.load %arg5[%c0_10, %c0_11] : memref<8x128xf32, #tpu.memory_space<vmem>>, vector<8x128xf32>
      %14 = vector.shape_cast %13 : vector<8x128xf32> to vector<1x8x128xf32>
      %cst = arith.constant dense<0.000000e+00> : vector<8x128xf32>
      %15 = vector.multi_reduction <add>, %14, %cst [0] : vector<1x8x128xf32> to vector<8x128xf32>
      %c0_12 = arith.constant 0 : index
      %c0_13 = arith.constant 0 : index
      %16 = vector.load %arg4[%c0_12, %c0_13] : memref<8x128xf32, #tpu.memory_space<vmem>>, vector<8x128xf32>
      tpu.vector_store %arg4[%c0_12, %c0_13], %15 {strides = array<i32>} : memref<8x128xf32, #tpu.memory_space<vmem>>, vector<8x128xf32>,
    } else {
    }
    return
  }
  func.func @transform_0(%arg0: i32, %arg1: i32) -> (i32, i32) {
    %c1_i32 = arith.constant 1 : i32
    %0 = arith.muli %arg0, %c1_i32 : i32
    %1 = arith.addi %0, %arg1 : i32
    %c0_i32 = arith.constant 0 : i32
    %c0_i32_0 = arith.constant 0 : i32
    return %1, %c0_i32 : i32, i32
  }
  func.func @transform_1(%arg0: i32, %arg1: i32) -> (i32, i32) {
    %c1_i32 = arith.constant 1 : i32
    %0 = arith.muli %arg0, %c1_i32 : i32
    %1 = arith.addi %0, %arg1 : i32
    %c0_i32 = arith.constant 0 : i32
    %c0_i32_0 = arith.constant 0 : i32
    return %1, %c0_i32 : i32, i32
  }
  func.func @transform_2(%arg0: i32, %arg1: i32) -> (i32, i32) {
    %c0_i32 = arith.constant 0 : i32
    %c0_i32_0 = arith.constant 0 : i32
    return %arg0, %c0_i32 : i32, i32
  }
}

</mosaic_0001>

<llo_original>
// kernel: tpu_custom_call.1
$region0: #{tpu_custom_call.1}
  #allocation0 [shape = 'u32[]', space=smem, size = 0x4, offset = 0x4, fixed_abs, tag = 'smem constant byte address 0x4 - core index']
  #allocation1 [shape = 'u32[144,128]{1,0:T(1,128)}', space=vmem, size = 0x12000, scoped, tag = 'internal scratch']
  #allocation2 [shape = 'f32[8,128]{1,0:T(8,128)}', space=vmem, size = 0x1000, scoped, tag = 'scratch operand']
  %s0 = inlined_call_operand.hbm [shape: f32[16,128], index: 0, kind: input, shape index: {}]
  %s1 = inlined_call_operand.hbm [shape: f32[16,128], index: 1, kind: input, shape index: {}]
  %s2 = inlined_call_operand.hbm [shape: f32[16,128], index: 2, kind: output, shape index: {}]
  %s3 = sld [smem:[#allocation0]]
  $region57: #{tpu_custom_call.1} parent=0
    _
  %s5 = ssub.s32 1, %s3
  %s6 = scalar_select 0, %s5, %s3
  $region1: #{tpu_custom_call.1} parent=0
    #allocation3 [shape = 'u8[8192]{0}', space=vmem, size = 0x2000, scoped, tag = 'input window, operand 0']
    #allocation4 [shape = 's32[2]{0}', space=sflag, size = 0x8, scoped, tag = 'scoped memory for tpu_custom_call.1']
    #allocation5 [shape = 's32[2]{0}', space=sflag, size = 0x8, scoped, tag = 'scoped memory for tpu_custom_call.1']
    #allocation6 [shape = 'u8[8192]{0}', space=vmem, size = 0x2000, scoped, tag = 'input window, operand 1']
    #allocation7 [shape = 's32[2]{0}', space=sflag, size = 0x8, scoped, tag = 'scoped memory for tpu_custom_call.1']
    #allocation8 [shape = 'u8[8192]{0}', space=vmem, size = 0x2000, scoped, tag = 'output window, operand 0']
    %7 = vsyncpa [#allocation4], 0
    %s8 = scalar_lea.sflag [#allocation4], 1
    %9 = vsyncpa %s8, 0
    %10 = vsyncpa [#allocation7], 0
    %s11 = scalar_lea.sflag [#allocation7], 1
    %12 = vsyncpa %s11, 0
    %13 = vsyncpa [#allocation5], 0
    %s14 = scalar_lea.sflag [#allocation5], 1
    %15 = vsyncpa %s14, 0
    loop: start=0, step=1, limit=4
    $region2: #{tpu_custom_call.1} parent=1 // loop_pre_header
      _
    $region3: #{tpu_custom_call.1} parent=1 // loop_header
      %s17 = sphi 0, %s21
      %p18 = scmp.ge.s32.totalorder %s17, 4
      %s24 = sphi 0, %s36
      %s25 = sphi 0, %s32
      %s26 = sphi 0, %s24
      %s27 = sphi 0, %s25
      %s28 = sphi 0, %s26
      %s29 = sphi 0, %s27
      %s41 = sphi 0, %s43
      %s44 = sphi 0, %s41
      %s45 = sphi 0, %s44
      %s61 = sphi 0, %s45
      %s69 = sphi 0, %s71
      %s72 = sphi 0, %s69
      %s73 = sphi 0, %s72
      %s89 = sphi 0, %s73
      %s95 = sphi 0, %s97
      %s98 = sphi 0, %s95
      %s99 = sphi 0, %s98
      %s115 = sphi 0, %s99
    $region4: #{tpu_custom_call.1} parent=1 // loop_header_branch
      %20 = sbr.rel (%p18) target = $region8
    $region5: #{tpu_custom_call.1} parent=1 // loop_body
      %s22 = ssub.s32 %s17, 1
      %s23 = ssub.s32 %s17, 2
      %s30 = sadd.s32 1, %s25
      %p31 = scmp.ge.s32.totalorder %s30, 1
      %s32 = scalar_select %p31, 0, %s30
      %s33 = sadd.s32 1, %s24
      %s34 = scalar_select %p31, %s33, %s24
      %p35 = scmp.ge.s32.totalorder %s34, 2
      %s36 = scalar_select %p35, 0, %s34
      %s37 = sadd.s32 %s24, %s25
      %s38 = sadd.s32 %s36, %s32
      %s39 = ssub.s32 %s37, %s38
      %p40 = scmp.eq.s32.totalorder %s39, 0
      %s42 = sadd.s32 %s41, 1
      %s43 = scalar_select %p40, %s41, %s42
      %p46 = pneg %p40
      %p47 = scmp.eq.s32.totalorder %s17, 1
      %p48 = por %p46, %p47
      %p49 = scmp.ne.s32.totalorder %s41, %s44
      %p50 = scmp.eq.s32.totalorder %s17, 0
      %p51 = por %p49, %p50
      %p52 = scmp.ne.s32.totalorder %s41, %s44
      %p53 = scmp.eq.s32.totalorder %s22, 1
      %p54 = por %p52, %p53
      %p55 = scmp.ne.s32.totalorder %s44, %s45
      %p56 = scmp.eq.s32.totalorder %s22, 0
      %p57 = por %p55, %p56
      %p58 = scmp.ne.s32.totalorder %s44, %s45
      %p59 = scmp.eq.s32.totalorder %s23, 1
      %p60 = por %p58, %p59
      %p62 = scmp.ne.s32.totalorder %s45, %s61
      %p63 = scmp.eq.s32.totalorder %s23, 0
      %p64 = por %p62, %p63
      %s65 = sadd.s32 %s24, %s25
      %s66 = sadd.s32 %s36, %s32
      %s67 = ssub.s32 %s65, %s66
      %p68 = scmp.eq.s32.totalorder %s67, 0
      %s70 = sadd.s32 %s69, 1
      %s71 = scalar_select %p68, %s69, %s70
      %p74 = pneg %p68
      %p75 = scmp.eq.s32.totalorder %s17, 1
      %p76 = por %p74, %p75
      %p77 = scmp.ne.s32.totalorder %s69, %s72
      %p78 = scmp.eq.s32.totalorder %s17, 0
      %p79 = por %p77, %p78
      %p80 = scmp.ne.s32.totalorder %s69, %s72
      %p81 = scmp.eq.s32.totalorder %s22, 1
      %p82 = por %p80, %p81
      %p83 = scmp.ne.s32.totalorder %s72, %s73
      %p84 = scmp.eq.s32.totalorder %s22, 0
      %p85 = por %p83, %p84
      %p86 = scmp.ne.s32.totalorder %s72, %s73
      %p87 = scmp.eq.s32.totalorder %s23, 1
      %p88 = por %p86, %p87
      %p90 = scmp.ne.s32.totalorder %s73, %s89
      %p91 = scmp.eq.s32.totalorder %s23, 0
      %p92 = por %p90, %p91
      %s93 = ssub.s32 %s24, %s36
      %p94 = scmp.eq.s32.totalorder %s93, 0
      %s96 = sadd.s32 %s95, 1
      %s97 = scalar_select %p94, %s95, %s96
      %p100 = pneg %p94
      %p101 = scmp.eq.s32.totalorder %s17, 1
      %p102 = por %p100, %p101
      %p103 = scmp.ne.s32.totalorder %s95, %s98
      %p104 = scmp.eq.s32.totalorder %s17, 0
      %p105 = por %p103, %p104
      %p106 = scmp.ne.s32.totalorder %s95, %s98
      %p107 = scmp.eq.s32.totalorder %s22, 1
      %p108 = por %p106, %p107
      %p109 = scmp.ne.s32.totalorder %s98, %s99
      %p110 = scmp.eq.s32.totalorder %s22, 0
      %p111 = por %p109, %p110
      %p112 = scmp.ne.s32.totalorder %s98, %s99
      %p113 = scmp.eq.s32.totalorder %s23, 1
      %p114 = por %p112, %p113
      %p116 = scmp.ne.s32.totalorder %s99, %s115
      %p117 = scmp.eq.s32.totalorder %s23, 0
      %p118 = por %p116, %p117
      %p119 = scmp.le.s32.totalorder 1, %s17
      %p120 = scmp.lt.s32.totalorder %s17, 3
      %p121 = pnand %p119, %p120
      %p122 = pneg %p121
      // Predicated region
      $region9: #{tpu_custom_call.1} parent=5 // pred_check
        _
      $region10: #{tpu_custom_call.1} parent=5 // pred_check_branch
        %124 = sbr.rel (%p121) target = $region12
      $region11: #{tpu_custom_call.1} parent=5 // pred_region
        %s125 = ssub.s32 %s17, 1
      $region12: #{tpu_custom_call.1} parent=5 // pred_fallthru
        _
      %p126 = scmp.lt.s32.totalorder %s17, 2
      // Predicated region
      $region13: #{tpu_custom_call.1} parent=5 // pred_check
        %p127 = pneg %p126
      $region14: #{tpu_custom_call.1} parent=5 // pred_check_branch
        %129 = sbr.rel (%p127) target = $region16
      $region15: #{tpu_custom_call.1} parent=5 // pred_region
        // Predicated region
        $region17: #{tpu_custom_call.1} parent=15 // pred_check
          %p130 = pneg %p51
        $region18: #{tpu_custom_call.1} parent=15 // pred_check_branch
          %132 = sbr.rel (%p130) target = $region20
        $region19: #{tpu_custom_call.1} parent=15 // pred_region
          %s133 = sand.u32 %s41, 1
          %s134 = scalar_lea.sflag [#allocation4], %s133
          %s135 = sand.u32 %s41, 1
          %s136 = smul.addr %s135, 8
          %s137 = scalar_lea.vmem [#allocation3], %s136
          %s138 = sadd.s32 %s24, %s25
          %s140 = ssub.s32 128, 128
          %141 = vsyncadd %s134, %s140
          %s142 = smul.addr %s138, 128
          %s143 = scalar_lea.hbm %s0, %s142
          %s145 = sshll.u32 %s137, 4
          %s146 = int_to_ptr.vmem [resolvable:$true] %s145
          %148 = dma.hbm_to_vmem [thread:$0]  %s143, 128, %s146, %s134
        $region20: #{tpu_custom_call.1} parent=15 // pred_fallthru
          _
        // Predicated region
        $region21: #{tpu_custom_call.1} parent=15 // pred_check
          %p149 = pneg %p79
        $region22: #{tpu_custom_call.1} parent=15 // pred_check_branch
          %151 = sbr.rel (%p149) target = $region24
        $region23: #{tpu_custom_call.1} parent=15 // pred_region
          %s152 = sand.u32 %s69, 1
          %s153 = scalar_lea.sflag [#allocation7], %s152
          %s154 = sand.u32 %s69, 1
          %s155 = smul.addr %s154, 8
          %s156 = scalar_lea.vmem [#allocation6], %s155
          %s157 = sadd.s32 %s24, %s25
          %s159 = ssub.s32 128, 128
          %160 = vsyncadd %s153, %s159
          %s161 = smul.addr %s157, 128
          %s162 = scalar_lea.hbm %s1, %s161
          %s164 = sshll.u32 %s156, 4
          %s165 = int_to_ptr.vmem [resolvable:$true] %s164
          %167 = dma.hbm_to_vmem [thread:$0]  %s162, 128, %s165, %s153
        $region24: #{tpu_custom_call.1} parent=15 // pred_fallthru
          _
      $region16: #{tpu_custom_call.1} parent=5 // pred_fallthru
        _
      %p168 = scmp.le.s32.totalorder 1, %s17
      %p169 = scmp.lt.s32.totalorder %s17, 3
      %p170 = pnand %p168, %p169
      %p171 = pneg %p170
      // Predicated region
      $region25: #{tpu_custom_call.1} parent=5 // pred_check
        _
      $region26: #{tpu_custom_call.1} parent=5 // pred_check_branch
        %173 = sbr.rel (%p170) target = $region28
      $region27: #{tpu_custom_call.1} parent=5 // pred_region
        %s174 = ssub.s32 %s17, 1
        %s175 = sand.u32 %s44, 1
        %s176 = scalar_lea.sflag [#allocation4], %s175
        %s177 = sand.u32 %s44, 1
        %s178 = smul.addr %s177, 8
        %s179 = scalar_lea.vmem [#allocation3], %s178
        // Predicated region
        $region29: #{tpu_custom_call.1} parent=27 // pred_check
          %p180 = pneg %p57
        $region30: #{tpu_custom_call.1} parent=27 // pred_check_branch
          %182 = sbr.rel (%p180) target = $region32
        $region31: #{tpu_custom_call.1} parent=27 // pred_region
          %183 = dma.done %s176, 128
        $region32: #{tpu_custom_call.1} parent=27 // pred_fallthru
          _
        %s184 = sand.u32 %s72, 1
        %s185 = scalar_lea.sflag [#allocation7], %s184
        %s186 = sand.u32 %s72, 1
        %s187 = smul.addr %s186, 8
        %s188 = scalar_lea.vmem [#allocation6], %s187
        // Predicated region
        $region33: #{tpu_custom_call.1} parent=27 // pred_check
          %p189 = pneg %p85
        $region34: #{tpu_custom_call.1} parent=27 // pred_check_branch
          %191 = sbr.rel (%p189) target = $region36
        $region35: #{tpu_custom_call.1} parent=27 // pred_region
          %192 = dma.done %s185, 128
        $region36: #{tpu_custom_call.1} parent=27 // pred_fallthru
          _
        %s193 = sand.u32 %s44, 1
        %s194 = scalar_lea.sflag [#allocation4], %s193
        %s195 = sand.u32 %s44, 1
        %s196 = smul.addr %s195, 8
        %s197 = scalar_lea.vmem [#allocation3], %s196
        %p198 = pneg %p57
        %p199 = pneg %p54
        %s200 = sand.u32 %s72, 1
        %s201 = scalar_lea.sflag [#allocation7], %s200
        %s202 = sand.u32 %s72, 1
        %s203 = smul.addr %s202, 8
        %s204 = scalar_lea.vmem [#allocation6], %s203
        %p205 = pneg %p85
        %p206 = pneg %p82
        %p207 = pneg %p111
        %p208 = pneg %p108
        %s209 = sand.u32 %s98, 1
        %s210 = scalar_lea.sflag [#allocation5], %s209
        %s211 = sand.u32 %s98, 1
        %s212 = smul.addr %s211, 8
        %s213 = scalar_lea.vmem [#allocation8], %s212
        %s214 = sadd.s32 %s26, %s27
        %s215 = sadd.s32 %s26, %s27
        %p216 = scmp.eq.s32.totalorder %s27, 0
        // Predicated region
        $region37: #{tpu_custom_call.1} parent=27 // pred_check
          %p217 = pneg %p216
        $region38: #{tpu_custom_call.1} parent=27 // pred_check_branch
          %219 = sbr.rel (%p217) target = $region40
        $region39: #{tpu_custom_call.1} parent=27 // pred_region
          %220 = vst [vmem:[#allocation2] sm:$0xff] 0.0
        $region40: #{tpu_custom_call.1} parent=27 // pred_fallthru
          _
        %v221 = vld [vmem:[%s179] sm:$0xff]
        %v222 = vld [vmem:[%s188] sm:$0xff]
        %v223 = vld [vmem:[#allocation2] sm:$0xff]
        %v224 = vsub.f32 %v221, %v222
        %v225 = vand.u32 2147483647, %v224
        %v226 = vadd.f32 %v223, %v225
        %227 = vst [vmem:[#allocation2] sm:$0xff] %v226
        // Predicated region
        $region41: #{tpu_custom_call.1} parent=27 // pred_check
          %p228 = pneg %p216
        $region42: #{tpu_custom_call.1} parent=27 // pred_check_branch
          %230 = sbr.rel (%p228) target = $region44
        $region43: #{tpu_custom_call.1} parent=27 // pred_region
          %v231 = vld [vmem:[#allocation2] sm:$0xff]
          %v232 = vadd.f32 %v231, 0.0
          %233 = vst [vmem:[%s213] sm:$0xff] %v232
        $region44: #{tpu_custom_call.1} parent=27 // pred_fallthru
          _
        %s234 = sand.u32 %s98, 1
        %s235 = scalar_lea.sflag [#allocation5], %s234
        %s236 = sand.u32 %s98, 1
        %s237 = smul.addr %s236, 8
        %s238 = scalar_lea.vmem [#allocation8], %s237
        // Predicated region
        $region45: #{tpu_custom_call.1} parent=27 // pred_check
          %p239 = pneg %p108
        $region46: #{tpu_custom_call.1} parent=27 // pred_check_branch
          %241 = sbr.rel (%p239) target = $region48
        $region47: #{tpu_custom_call.1} parent=27 // pred_region
          %s243 = ssub.s32 128, 128
          %244 = vsyncadd %s235, %s243
          %s245 = smul.addr %s26, 128
          %s246 = scalar_lea.hbm %s2, %s245
          %s248 = sshll.u32 %s238, 4
          %s249 = int_to_ptr.vmem [resolvable:$true] %s248
          %251 = dma.vmem_to_hbm [thread:$0]  %s249, 128, %s246, %s235
        $region48: #{tpu_custom_call.1} parent=27 // pred_fallthru
          _
      $region28: #{tpu_custom_call.1} parent=5 // pred_fallthru
        _
      %p252 = scmp.le.s32.totalorder 2, %s17
      // Predicated region
      $region49: #{tpu_custom_call.1} parent=5 // pred_check
        %p253 = pneg %p252
      $region50: #{tpu_custom_call.1} parent=5 // pred_check_branch
        %255 = sbr.rel (%p253) target = $region52
      $region51: #{tpu_custom_call.1} parent=5 // pred_region
        %s256 = ssub.s32 %s17, 2
        // Predicated region
        $region53: #{tpu_custom_call.1} parent=51 // pred_check
          %p257 = pneg %p114
        $region54: #{tpu_custom_call.1} parent=51 // pred_check_branch
          %259 = sbr.rel (%p257) target = $region56
        $region55: #{tpu_custom_call.1} parent=51 // pred_region
          %s260 = sand.u32 %s99, 1
          %s261 = scalar_lea.sflag [#allocation5], %s260
          %s262 = sand.u32 %s99, 1
          %s263 = smul.addr %s262, 8
          %s264 = scalar_lea.vmem [#allocation8], %s263
          %265 = dma.done %s261, 128
        $region56: #{tpu_custom_call.1} parent=51 // pred_fallthru
          _
      $region52: #{tpu_custom_call.1} parent=5 // pred_fallthru
        _
    $region6: #{tpu_custom_call.1} parent=1 // loop_footer
      %s21 = sadd.s32 1, %s17
    $region7: #{tpu_custom_call.1} parent=1 // loop_footer_branch
      %16 = sbr.rel target = $region3
    $region8: #{tpu_custom_call.1} parent=1 // loop_exit
      _
    %266 = vsyncpa [#allocation4], 1
    %s267 = scalar_lea.sflag [#allocation4], 1
    %268 = vsyncpa %s267, 1
    %269 = vsyncpa [#allocation7], 1
    %s270 = scalar_lea.sflag [#allocation7], 1
    %271 = vsyncpa %s270, 1
    %272 = vsyncpa [#allocation5], 1
    %s273 = scalar_lea.sflag [#allocation5], 1
    %274 = vsyncpa %s273, 1

</llo_original>
